<compile_context>
chip_gen: v6e
topology: v6e:2x2x1
jax: 0.10.0
libtpu: 0.0.40
codegen_flags: <defaults>
</compile_context>

<pallas_src>
import jax
import jax.numpy as jnp
from jax.experimental import pallas as pl
from jax.experimental.pallas import tpu as pltpu

LANE = 128
SUBLANE_BF16 = 16          # bf16 packs 16 rows per sublane tile
MAX_TILE_B = 8192          # ~4.5 MiB double-buffered working set; fits all gens
SPLIT_THRESHOLD = 512      # give megacore (v7x) >= 2 grid steps above this


def _round_up(n, m):
    return ((n + m - 1) // m) * m


def mlp_kernel(x_ref, w1_ref, b1_ref, w2_ref, b2_ref, w3_ref, b3_ref, o_ref):
    # Layer 1: Linear(num_features, 50) + Sigmoid.
    # bf16 operands on the MXU, f32 accumulation; epilogue in f32.
    h = jnp.dot(x_ref[...], w1_ref[...], preferred_element_type=jnp.float32)
    # sigmoid(x) = 0.5*(tanh(x/2)+1): single EUP transcendental, no VALU divide.
    h = 0.5 * (jnp.tanh(0.5 * (h + b1_ref[...])) + 1.0)
    # Layer 2: Linear(50, 50) + Sigmoid   (num_layers = max(1, 1) = 1 hidden block).
    h = jnp.dot(h.astype(jnp.bfloat16), w2_ref[...],
                preferred_element_type=jnp.float32)
    h = 0.5 * (jnp.tanh(0.5 * (h + b2_ref[...])) + 1.0)
    # Output layer: Linear(50, num_classes), logits (no activation).
    logits = jnp.dot(h.astype(jnp.bfloat16), w3_ref[...],
                     preferred_element_type=jnp.float32)
    o_ref[...] = (logits + b3_ref[...]).astype(o_ref.dtype)  # bf16 lane-dense store


def init_params(key, num_features, num_classes, hidden=50):
    """PyTorch-style init: U(-1/sqrt(fan_in), 1/sqrt(fan_in)), f32, unpadded."""
    def linear(key, fan_in, fan_out):
        kw, kb = jax.random.split(key)
        bound = 1.0 / jnp.sqrt(jnp.float32(fan_in))
        w = jax.random.uniform(kw, (fan_in, fan_out), jnp.float32, -bound, bound)
        b = jax.random.uniform(kb, (1, fan_out), jnp.float32, -bound, bound)
        return w, b

    k1, k2, k3 = jax.random.split(key, 3)
    w1, b1 = linear(k1, num_features, hidden)
    w2, b2 = linear(k2, hidden, hidden)
    w3, b3 = linear(k3, hidden, num_classes)
    return (w1, b1, w2, b2, w3, b3)


def prepare_params(params):
    """Pad hidden/class dims to 128 lanes (zeros), cast weights to bf16.

    w1 rows stay at num_features (x is read unpadded). Padded rows of w2/w3
    are zero so padded hidden lanes (sigmoid(0)=0.5) contribute exactly 0.
    """
    w1, b1, w2, b2, w3, b3 = params
    num_features, hidden = w1.shape
    num_classes = w3.shape[1]
    h_pad = _round_up(hidden, LANE)
    c_pad = _round_up(num_classes, LANE)

    def pad2(a, rows, cols):
        return jnp.pad(a, ((0, rows - a.shape[0]), (0, cols - a.shape[1])))

    w1p = pad2(w1, num_features, h_pad).astype(jnp.bfloat16)  # rows NOT padded
    b1p = pad2(b1, 1, h_pad)                                  # f32
    w2p = pad2(w2, h_pad, h_pad).astype(jnp.bfloat16)
    b2p = pad2(b2, 1, h_pad)                                  # f32
    w3p = pad2(w3, h_pad, c_pad).astype(jnp.bfloat16)
    b3p = pad2(b3, 1, c_pad)                                  # f32

    # Guard the cancellation invariant (padded rows must be exactly zero).
    assert float(jnp.abs(w2p[hidden:, :]).max()) == 0.0
    assert float(jnp.abs(w3p[hidden:, :]).max()) == 0.0
    return (w1p, b1p, w2p, b2p, w3p, b3p)


def _choose_tiling(batch):
    """Pick (tile_b, num_tiles): big tiles to amortize per-step overhead, but
    at least 2 grid steps for mid/large batches so v7x megacore has work."""
    num_tiles = pl.cdiv(batch, MAX_TILE_B)
    if num_tiles < 2 and batch >= SPLIT_THRESHOLD:
        num_tiles = 2
    tile_b = _round_up(pl.cdiv(batch, num_tiles), SUBLANE_BF16)
    return tile_b, num_tiles


def mlp_forward(x, padded_params, num_classes):
    """x: (batch, num_features) f32/bf16. Returns (batch, num_classes) f32."""
    w1, b1, w2, b2, w3, b3 = padded_params
    batch, num_features = x.shape
    assert num_features == w1.shape[0]
    h_pad = w1.shape[1]
    c_pad = w3.shape[1]

    tile_b, num_tiles = _choose_tiling(batch)
    b_pad = tile_b * num_tiles

    # Pad only the batch dim; features stay unpadded. bf16 halves x DMA bytes.
    x_p = x
    if b_pad != batch:
        x_p = jnp.pad(x, ((0, b_pad - batch), (0, 0)))
    x_p = x_p.astype(jnp.bfloat16)

    # Weights/biases: constant index_map -> DMA'd once, VMEM-resident across
    # grid steps. Only x (unpadded features) and the bf16 output stream HBM.
    const = lambda i: (0, 0)
    in_specs = [
        # Full last-dim block (num_features) -> legal via full-array-dim rule.
        pl.BlockSpec((tile_b, num_features), lambda i: (i, 0)),   # x: batch-tiled
        pl.BlockSpec((num_features, h_pad), const),               # w1
        pl.BlockSpec((1, h_pad), const),                          # b1
        pl.BlockSpec((h_pad, h_pad), const),                      # w2
        pl.BlockSpec((1, h_pad), const),                          # b2
        pl.BlockSpec((h_pad, c_pad), const),                      # w3
        pl.BlockSpec((1, c_pad), const),                          # b3
    ]
    out_specs = pl.BlockSpec((tile_b, c_pad), lambda i: (i, 0))   # lane-dense bf16

    weight_bytes = ((w1.size + w2.size + w3.size) * 2
                    + (b1.size + b2.size + b3.size) * 4)
    cost = pl.CostEstimate(
        flops=2 * b_pad * (num_features * h_pad + h_pad * h_pad + h_pad * c_pad),
        transcendentals=2 * b_pad * h_pad,
        bytes_accessed=(b_pad * num_features * 2      # x bf16, unpadded features
                        + b_pad * c_pad * 2           # out bf16
                        + weight_bytes),
    )

    out_padded = pl.pallas_call(
        mlp_kernel,
        out_shape=jax.ShapeDtypeStruct((b_pad, c_pad), jnp.bfloat16),
        grid=(num_tiles,),
        in_specs=in_specs,
        out_specs=out_specs,
        compiler_params=pltpu.CompilerParams(
            dimension_semantics=("parallel",),
        ),
        cost_estimate=cost,
    )(x_p, w1, b1, w2, b2, w3, b3)

    # Strip padding / upcast outside the kernel (free layout plumbing).
    return out_padded[:batch, :num_classes].astype(jnp.float32)


if __name__ == "__main__":
    key = jax.random.PRNGKey(0)
    kx, kp = jax.random.split(key)

    batch = 8
    num_features = 8     # diabetes dataset: 8 features
    num_classes = 2
    hidden = 50

    x = jax.random.normal(kx, (batch, num_features), dtype=jnp.float32)
    params = init_params(kp, num_features, num_classes, hidden)
    padded_params = prepare_params(params)

    out = mlp_forward(x, padded_params, num_classes)
    out = jax.block_until_ready(out)

    # Pure-JAX f32 reference (same math, unpadded params).
    w1, b1, w2, b2, w3, b3 = params
    ref = jax.nn.sigmoid(x @ w1 + b1)
    ref = jax.nn.sigmoid(ref @ w2 + b2)
    ref = ref @ w3 + b3

    assert out.shape == (batch, num_classes)
    # bf16 matmul operands + bf16 output -> looser tolerance than pure-f32.
    assert jnp.allclose(out, ref, atol=3e-2, rtol=3e-2), "mismatch vs reference"

    print("KERNEL_OK")
</pallas_src>

<mosaic_0001>
module attributes {stable_mosaic.version = 11 : i64} {
  func.func @mlp_kernel(%arg0: i32, %arg1: memref<16x8xbf16, #tpu.memory_space<vmem>>, %arg2: memref<8x128xbf16, #tpu.memory_space<vmem>>, %arg3: memref<1x128xf32, #tpu.memory_space<vmem>>, %arg4: memref<128x128xbf16, #tpu.memory_space<vmem>>, %arg5: memref<1x128xf32, #tpu.memory_space<vmem>>, %arg6: memref<128x128xbf16, #tpu.memory_space<vmem>>, %arg7: memref<1x128xf32, #tpu.memory_space<vmem>>, %arg8: memref<16x128xbf16, #tpu.memory_space<vmem>>) attributes {dimension_semantics = [#tpu.dimension_semantics<parallel>], iteration_bounds = array<i64: 1>, scalar_prefetch = 0 : i64, scratch_operands = 0 : i64, tpu.core_type = #tpu.core_type<tc>, window_params = [{transform_indices = @transform_0, window_bounds = array<i64: 16, 8>}, {pipeline_mode = #tpu.pipeline_mode<synchronous>, transform_indices = @transform_1, window_bounds = array<i64: 8, 128>}, {pipeline_mode = #tpu.pipeline_mode<synchronous>, transform_indices = @transform_2, window_bounds = array<i64: 1, 128>}, {pipeline_mode = #tpu.pipeline_mode<synchronous>, transform_indices = @transform_3, window_bounds = array<i64: 128, 128>}, {pipeline_mode = #tpu.pipeline_mode<synchronous>, transform_indices = @transform_4, window_bounds = array<i64: 1, 128>}, {pipeline_mode = #tpu.pipeline_mode<synchronous>, transform_indices = @transform_5, window_bounds = array<i64: 128, 128>}, {pipeline_mode = #tpu.pipeline_mode<synchronous>, transform_indices = @transform_6, window_bounds = array<i64: 1, 128>}, {transform_indices = @transform_7, window_bounds = array<i64: 16, 128>}]} {
    %c0 = arith.constant 0 : index
    %c0_0 = arith.constant 0 : index
    %0 = vector.load %arg1[%c0, %c0_0] : memref<16x8xbf16, #tpu.memory_space<vmem>>, vector<16x8xbf16>
    %c0_1 = arith.constant 0 : index
    %c0_2 = arith.constant 0 : index
    %1 = vector.load %arg2[%c0_1, %c0_2] : memref<8x128xbf16, #tpu.memory_space<vmem>>, vector<8x128xbf16>
    %cst = arith.constant dense<0.000000e+00> : vector<16x128xf32>
    %2 = tpu.matmul %0, %1, %cst {dimension_numbers = #tpu.dot_dimension_numbers<[1], [0], [0], [1], [0, 0, 1, 1], [], []>} : vector<16x8xbf16>, vector<8x128xbf16>, vector<16x128xf32> -> vector<16x128xf32>
    %c0_3 = arith.constant 0 : index
    %c0_4 = arith.constant 0 : index
    %3 = vector.load %arg3[%c0_3, %c0_4] : memref<1x128xf32, #tpu.memory_space<vmem>>, vector<1x128xf32>
    %4 = vector.broadcast %3 : vector<1x128xf32> to vector<16x128xf32>
    %5 = arith.addf %2, %4 : vector<16x128xf32>
    %cst_5 = arith.constant 5.000000e-01 : f32
    %6 = vector.broadcast %cst_5 : f32 to vector<16x128xf32>
    %7 = arith.mulf %6, %5 : vector<16x128xf32>
    %8 = math.tanh %7 : vector<16x128xf32>
    %cst_6 = arith.constant 1.000000e+00 : f32
    %9 = vector.broadcast %cst_6 : f32 to vector<16x128xf32>
    %10 = arith.addf %8, %9 : vector<16x128xf32>
    %cst_7 = arith.constant 5.000000e-01 : f32
    %11 = vector.broadcast %cst_7 : f32 to vector<16x128xf32>
    %12 = arith.mulf %11, %10 : vector<16x128xf32>
    %13 = arith.truncf %12 : vector<16x128xf32> to vector<16x128xbf16>
    %c0_8 = arith.constant 0 : index
    %c0_9 = arith.constant 0 : index
    %14 = vector.load %arg4[%c0_8, %c0_9] : memref<128x128xbf16, #tpu.memory_space<vmem>>, vector<128x128xbf16>
    %cst_10 = arith.constant dense<0.000000e+00> : vector<16x128xf32>
    %15 = tpu.matmul %13, %14, %cst_10 {dimension_numbers = #tpu.dot_dimension_numbers<[1], [0], [0], [1], [0, 0, 1, 1], [], []>} : vector<16x128xbf16>, vector<128x128xbf16>, vector<16x128xf32> -> vector<16x128xf32>
    %c0_11 = arith.constant 0 : index
    %c0_12 = arith.constant 0 : index
    %16 = vector.load %arg5[%c0_11, %c0_12] : memref<1x128xf32, #tpu.memory_space<vmem>>, vector<1x128xf32>
    %17 = vector.broadcast %16 : vector<1x128xf32> to vector<16x128xf32>
    %18 = arith.addf %15, %17 : vector<16x128xf32>
    %cst_13 = arith.constant 5.000000e-01 : f32
    %19 = vector.broadcast %cst_13 : f32 to vector<16x128xf32>
    %20 = arith.mulf %19, %18 : vector<16x128xf32>
    %21 = math.tanh %20 : vector<16x128xf32>
    %cst_14 = arith.constant 1.000000e+00 : f32
    %22 = vector.broadcast %cst_14 : f32 to vector<16x128xf32>
    %23 = arith.addf %21, %22 : vector<16x128xf32>
    %cst_15 = arith.constant 5.000000e-01 : f32
    %24 = vector.broadcast %cst_15 : f32 to vector<16x128xf32>
    %25 = arith.mulf %24, %23 : vector<16x128xf32>
    %26 = arith.truncf %25 : vector<16x128xf32> to vector<16x128xbf16>
    %c0_16 = arith.constant 0 : index
    %c0_17 = arith.constant 0 : index
    %27 = vector.load %arg6[%c0_16, %c0_17] : memref<128x128xbf16, #tpu.memory_space<vmem>>, vector<128x128xbf16>
    %cst_18 = arith.constant dense<0.000000e+00> : vector<16x128xf32>
    %28 = tpu.matmul %26, %27, %cst_18 {dimension_numbers = #tpu.dot_dimension_numbers<[1], [0], [0], [1], [0, 0, 1, 1], [], []>} : vector<16x128xbf16>, vector<128x128xbf16>, vector<16x128xf32> -> vector<16x128xf32>
    %c0_19 = arith.constant 0 : index
    %c0_20 = arith.constant 0 : index
    %29 = vector.load %arg7[%c0_19, %c0_20] : memref<1x128xf32, #tpu.memory_space<vmem>>, vector<1x128xf32>
    %30 = vector.broadcast %29 : vector<1x128xf32> to vector<16x128xf32>
    %31 = arith.addf %28, %30 : vector<16x128xf32>
    %32 = arith.truncf %31 : vector<16x128xf32> to vector<16x128xbf16>
    %c0_21 = arith.constant 0 : index
    %c0_22 = arith.constant 0 : index
    %33 = vector.load %arg8[%c0_21, %c0_22] : memref<16x128xbf16, #tpu.memory_space<vmem>>, vector<16x128xbf16>
    tpu.vector_store %arg8[%c0_21, %c0_22], %32 {strides = array<i32>} : memref<16x128xbf16, #tpu.memory_space<vmem>>, vector<16x128xbf16>,
    return
  }
  func.func @transform_0(%arg0: i32) -> (i32, i32) {
    %c0_i32 = arith.constant 0 : i32
    %c0_i32_0 = arith.constant 0 : i32
    return %arg0, %c0_i32 : i32, i32
  }
  func.func @transform_1(%arg0: i32) -> (i32, i32) {
    %c0_i32 = arith.constant 0 : i32
    %c0_i32_0 = arith.constant 0 : i32
    %c0_i32_1 = arith.constant 0 : i32
    return %c0_i32, %c0_i32_0 : i32, i32
  }
  func.func @transform_2(%arg0: i32) -> (i32, i32) {
    %c0_i32 = arith.constant 0 : i32
    %c0_i32_0 = arith.constant 0 : i32
    %c0_i32_1 = arith.constant 0 : i32
    return %c0_i32, %c0_i32_0 : i32, i32
  }
  func.func @transform_3(%arg0: i32) -> (i32, i32) {
    %c0_i32 = arith.constant 0 : i32
    %c0_i32_0 = arith.constant 0 : i32
    %c0_i32_1 = arith.constant 0 : i32
    return %c0_i32, %c0_i32_0 : i32, i32
  }
  func.func @transform_4(%arg0: i32) -> (i32, i32) {
    %c0_i32 = arith.constant 0 : i32
    %c0_i32_0 = arith.constant 0 : i32
    %c0_i32_1 = arith.constant 0 : i32
    return %c0_i32, %c0_i32_0 : i32, i32
  }
  func.func @transform_5(%arg0: i32) -> (i32, i32) {
    %c0_i32 = arith.constant 0 : i32
    %c0_i32_0 = arith.constant 0 : i32
    %c0_i32_1 = arith.constant 0 : i32
    return %c0_i32, %c0_i32_0 : i32, i32
  }
  func.func @transform_6(%arg0: i32) -> (i32, i32) {
    %c0_i32 = arith.constant 0 : i32
    %c0_i32_0 = arith.constant 0 : i32
    %c0_i32_1 = arith.constant 0 : i32
    return %c0_i32, %c0_i32_0 : i32, i32
  }
  func.func @transform_7(%arg0: i32) -> (i32, i32) {
    %c0_i32 = arith.constant 0 : i32
    %c0_i32_0 = arith.constant 0 : i32
    return %arg0, %c0_i32 : i32, i32
  }
}

</mosaic_0001>

<llo_original>
// kernel: tpu_custom_call.1
$region0: #{tpu_custom_call.1}
  #allocation0 [shape = 'u32[]', space=smem, size = 0x4, offset = 0x4, fixed_abs, tag = 'smem constant byte address 0x4 - core index']
  #allocation1 [shape = 'u32[144,128]{1,0:T(1,128)}', space=vmem, size = 0x12000, scoped, tag = 'internal scratch']
  %s0 = inlined_call_operand.vmem [shape: bf16[16,8], index: 0, kind: input, shape index: {}]
  %s1 = inlined_call_operand.vmem [shape: bf16[8,128], index: 1, kind: input, shape index: {}]
  %s2 = inlined_call_operand.vmem [shape: f32[1,128], index: 2, kind: input, shape index: {}]
  %s3 = inlined_call_operand.hbm [shape: bf16[128,128], index: 3, kind: input, shape index: {}]
  %s4 = inlined_call_operand.vmem [shape: f32[1,128], index: 4, kind: input, shape index: {}]
  %s5 = inlined_call_operand.hbm [shape: bf16[128,128], index: 5, kind: input, shape index: {}]
  %s6 = inlined_call_operand.vmem [shape: f32[1,128], index: 6, kind: input, shape index: {}]
  %s7 = inlined_call_operand.hbm [shape: bf16[16,128], index: 7, kind: output, shape index: {}]
  %s8 = sld [smem:[#allocation0]]
  $region46: #{tpu_custom_call.1} parent=0
    _
  %s10 = ssub.s32 1, %s8
  %s11 = scalar_select 0, %s10, %s8
  $region1: #{tpu_custom_call.1} parent=0
    #allocation2 [shape = 'u8[32768]{0}', space=vmem, size = 0x8000, scoped, tag = 'input window, operand 3, single buffered']
    #allocation3 [shape = 's32[1]{0}', space=sflag, size = 0x4, scoped, tag = 'scoped memory for tpu_custom_call.1']
    #allocation4 [shape = 's32[1]{0}', space=sflag, size = 0x4, scoped, tag = 'scoped memory for tpu_custom_call.1']
    #allocation5 [shape = 'u8[32768]{0}', space=vmem, size = 0x8000, scoped, tag = 'input window, operand 5, single buffered']
    #allocation6 [shape = 's32[1]{0}', space=sflag, size = 0x4, scoped, tag = 'scoped memory for tpu_custom_call.1']
    #allocation7 [shape = 'u8[4096]{0}', space=vmem, size = 0x1000, scoped, tag = 'output window, operand 0, single buffered']
    %12 = vsyncpa [#allocation3], 0
    %13 = vsyncpa [#allocation6], 0
    %14 = vsyncpa [#allocation4], 0
    // Predicated region
    $region2: #{tpu_custom_call.1} parent=1 // pred_check
      _
    $region3: #{tpu_custom_call.1} parent=1 // pred_check_branch
      %16 = sbr.rel (0) target = $region5
    $region4: #{tpu_custom_call.1} parent=1 // pred_region
      _
    $region5: #{tpu_custom_call.1} parent=1 // pred_fallthru
      _
    // Predicated region
    $region6: #{tpu_custom_call.1} parent=1 // pred_check
      _
    $region7: #{tpu_custom_call.1} parent=1 // pred_check_branch
      %18 = sbr.rel (0) target = $region9
    $region8: #{tpu_custom_call.1} parent=1 // pred_region
      _
    $region9: #{tpu_custom_call.1} parent=1 // pred_fallthru
      _
    // Predicated region
    $region10: #{tpu_custom_call.1} parent=1 // pred_check
      _
    $region11: #{tpu_custom_call.1} parent=1 // pred_check_branch
      %20 = sbr.rel (0) target = $region13
    $region12: #{tpu_custom_call.1} parent=1 // pred_region
      _
    $region13: #{tpu_custom_call.1} parent=1 // pred_fallthru
      _
    // Predicated region
    $region14: #{tpu_custom_call.1} parent=1 // pred_check
      _
    $region15: #{tpu_custom_call.1} parent=1 // pred_check_branch
      %22 = sbr.rel (0) target = $region17
    $region16: #{tpu_custom_call.1} parent=1 // pred_region
      %s24 = ssub.s32 1024, 1024
      %25 = vsyncadd [#allocation3], %s24
      %s26 = sshll.u32 [#allocation2], 4
      %s27 = int_to_ptr.vmem [resolvable:$true] %s26
      %32 = dma.hbm_to_vmem [thread:$0]  %s3, 1024, %s27, [#allocation3], 64, 64, 4
    $region17: #{tpu_custom_call.1} parent=1 // pred_fallthru
      _
    // Predicated region
    $region18: #{tpu_custom_call.1} parent=1 // pred_check
      _
    $region19: #{tpu_custom_call.1} parent=1 // pred_check_branch
      %34 = sbr.rel (0) target = $region21
    $region20: #{tpu_custom_call.1} parent=1 // pred_region
      _
    $region21: #{tpu_custom_call.1} parent=1 // pred_fallthru
      _
    // Predicated region
    $region22: #{tpu_custom_call.1} parent=1 // pred_check
      _
    $region23: #{tpu_custom_call.1} parent=1 // pred_check_branch
      %36 = sbr.rel (0) target = $region25
    $region24: #{tpu_custom_call.1} parent=1 // pred_region
      %s38 = ssub.s32 1024, 1024
      %39 = vsyncadd [#allocation6], %s38
      %s40 = sshll.u32 [#allocation5], 4
      %s41 = int_to_ptr.vmem [resolvable:$true] %s40
      %46 = dma.hbm_to_vmem [thread:$0]  %s5, 1024, %s41, [#allocation6], 64, 64, 4
    $region25: #{tpu_custom_call.1} parent=1 // pred_fallthru
      _
    // Predicated region
    $region26: #{tpu_custom_call.1} parent=1 // pred_check
      _
    $region27: #{tpu_custom_call.1} parent=1 // pred_check_branch
      %48 = sbr.rel (0) target = $region29
    $region28: #{tpu_custom_call.1} parent=1 // pred_region
      _
    $region29: #{tpu_custom_call.1} parent=1 // pred_fallthru
      _
    // Predicated region
    $region30: #{tpu_custom_call.1} parent=1 // pred_check
      _
    $region31: #{tpu_custom_call.1} parent=1 // pred_check_branch
      %50 = sbr.rel (0) target = $region33
    $region32: #{tpu_custom_call.1} parent=1 // pred_region
      %51 = dma.done [#allocation3], 1024
    $region33: #{tpu_custom_call.1} parent=1 // pred_fallthru
      _
    // Predicated region
    $region34: #{tpu_custom_call.1} parent=1 // pred_check
      _
    $region35: #{tpu_custom_call.1} parent=1 // pred_check_branch
      %53 = sbr.rel (0) target = $region37
    $region36: #{tpu_custom_call.1} parent=1 // pred_region
      %54 = dma.done [#allocation6], 1024
    $region37: #{tpu_custom_call.1} parent=1 // pred_fallthru
      _
    %v56 = vld [vmem:[%s0] sm:$0xf]
    %v57 = vld [vmem:[%s0 + $0x4] sm:$0xf]
    %v58 = vld [vmem:[%s1] sm:$0xf]
    %v59 = vld [vmem:[%s2] sm:$0x1]
    %v61 = vlaneseq
    %v62 = vshrl.u32 %v61, 7
    %v63 = vsub.s32 0, %v62
    %v64 = vrot.slane %v59, %v63
    %v68 = vunpack.c.l.b16 %v56
    %v69 = vunpack.c.l.b16 %v57
    %v70 = vpack.c.b16 %v69, %v68
    %vm71 = vcmask 64512
    %v73 = vsel %vm71, %v70, 0
    %vm75 = vcmask 1043456
    %v77 = vsel %vm75, %v58, 0
    %79 = vmatprep.subr.bf16.mxu0 0
    %80 = vmatpush1.bf16.msra.mxu0 0
    %81 = vmatprep.subr.bf16.mxu0 0
    %82 = vmatpush1.bf16.msra.mxu0 0
    %83 = vmatprep.subr.bf16.mxu0 0
    %84 = vmatpush1.bf16.msra.mxu0 0
    %85 = vmatprep.subr.bf16.mxu0 0
    %86 = vmatpush1.bf16.msra.mxu0 0
    %87 = vmatprep.subr.bf16.mxu0 0
    %88 = vmatpush1.bf16.msra.mxu0 0
    %89 = vmatprep.subr.bf16.mxu0 0
    %90 = vmatpush1.bf16.msra.mxu0 0
    %91 = vmatprep.subr.bf16.mxu0 0
    %92 = vmatpush1.bf16.msra.mxu0 0
    %93 = vmatprep.subr.bf16.mxu0 0
    %94 = vmatpush1.bf16.msra.mxu0 %v77
    %95 = vmatprep.subr.bf16.mxu0 0
    %96 = vmatpush2.bf16.msra.mxu0 0
    %97 = vmatprep.subr.bf16.mxu0 0
    %98 = vmatpush2.bf16.msra.mxu0 0
    %99 = vmatprep.subr.bf16.mxu0 0
    %100 = vmatpush2.bf16.msra.mxu0 0
    %101 = vmatprep.subr.bf16.mxu0 0
    %102 = vmatpush2.bf16.msra.mxu0 0
    %103 = vmatprep.subr.bf16.mxu0 0
    %104 = vmatpush2.bf16.msra.mxu0 0
    %105 = vmatprep.subr.bf16.mxu0 0
    %106 = vmatpush2.bf16.msra.mxu0 0
    %107 = vmatprep.subr.bf16.mxu0 0
    %108 = vmatpush2.bf16.msra.mxu0 0
    %109 = vmatprep.subr.bf16.mxu0 0
    %110 = vmatpush2.bf16.msra.mxu0 0
    %111 = vmatprep.mubr.bf16.mxu0 0
    %112 = vmatmul.mubr.bf16.gmra.mxu0 %v73
    %v113 = vpop.f32.mrf.mxu0
    %v114 = vadd.f32 %v64, %v113
    %v115 = vpop.f32.mrf.mxu0
    %v116 = vpop.f32.mrf.mxu0
    %v117 = vadd.f32 %v64, %v116
    %v118 = vpop.f32.mrf.mxu0
    %119 = vdwg.mxu0
    %v120 = vmul.f32 %v114, 0.5
    %v121 = vmul.f32 %v117, 0.5
    %v122 = vtanh.pop %v120
    %v123 = vtanh.pop %v121
    %v124 = vadd.f32 %v122, 1.0
    %v125 = vadd.f32 %v123, 1.0
    %v126 = vmul.f32 %v124, 0.5
    %v127 = vmul.f32 %v125, 0.5
    %v128 = vpack.c.bf16 %v127, %v126
    %v129 = vld [vmem:[#allocation2] sm:$0xf]
    %v130 = vld [vmem:[#allocation2 + $0x4] sm:$0xf]
    %v131 = vld [vmem:[#allocation2 + $0x8] sm:$0xf]
    %v132 = vld [vmem:[#allocation2 + $0xc] sm:$0xf]
    %v133 = vld [vmem:[#allocation2 + $0x10] sm:$0xf]
    %v134 = vld [vmem:[#allocation2 + $0x14] sm:$0xf]
    %v135 = vld [vmem:[#allocation2 + $0x18] sm:$0xf]
    %v136 = vld [vmem:[#allocation2 + $0x1c] sm:$0xf]
    %v137 = vld [vmem:[#allocation2 + $0x20] sm:$0xf]
    %v138 = vld [vmem:[#allocation2 + $0x24] sm:$0xf]
    %v139 = vld [vmem:[#allocation2 + $0x28] sm:$0xf]
    %v140 = vld [vmem:[#allocation2 + $0x2c] sm:$0xf]
    %v141 = vld [vmem:[#allocation2 + $0x30] sm:$0xf]
    %v142 = vld [vmem:[#allocation2 + $0x34] sm:$0xf]
    %v143 = vld [vmem:[#allocation2 + $0x38] sm:$0xf]
    %v144 = vld [vmem:[#allocation2 + $0x3c] sm:$0xf]
    %v145 = vld [vmem:[%s4] sm:$0x1]
    %v147 = vlaneseq
    %v148 = vshrl.u32 %v147, 7
    %v149 = vsub.s32 0, %v148
    %v150 = vrot.slane %v145, %v149
    %v168 = vunpack.c.l.b16 %v129
    %v169 = vunpack.c.l.b16 %v130
    %v170 = vunpack.c.l.b16 %v131
    %v171 = vunpack.c.l.b16 %v132
    %v172 = vunpack.c.l.b16 %v133
    %v173 = vunpack.c.l.b16 %v134
    %v174 = vunpack.c.l.b16 %v135
    %v175 = vunpack.c.l.b16 %v136
    %v176 = vunpack.c.l.b16 %v137
    %v177 = vunpack.c.l.b16 %v138
    %v178 = vunpack.c.l.b16 %v139
    %v179 = vunpack.c.l.b16 %v140
    %v180 = vunpack.c.l.b16 %v141
    %v181 = vunpack.c.l.b16 %v142
    %v182 = vunpack.c.l.b16 %v143
    %v183 = vunpack.c.l.b16 %v144
    %v184 = vpack.c.b16 %v169, %v168
    %v185 = vpack.c.b16 %v171, %v170
    %v186 = vpack.c.b16 %v173, %v172
    %v187 = vpack.c.b16 %v175, %v174
    %v188 = vpack.c.b16 %v177, %v176
    %v189 = vpack.c.b16 %v179, %v178
    %v190 = vpack.c.b16 %v181, %v180
    %v191 = vpack.c.b16 %v183, %v182
    %200 = vmatprep.subr.bf16.mxu0 0
    %201 = vmatpush1.bf16.msra.mxu0 %v191
    %202 = vmatprep.subr.bf16.mxu0 0
    %203 = vmatpush1.bf16.msra.mxu0 %v190
    %204 = vmatprep.subr.bf16.mxu0 0
    %205 = vmatpush1.bf16.msra.mxu0 %v189
    %206 = vmatprep.subr.bf16.mxu0 0
    %207 = vmatpush1.bf16.msra.mxu0 %v188
    %208 = vmatprep.subr.bf16.mxu0 0
    %209 = vmatpush1.bf16.msra.mxu0 %v187
    %210 = vmatprep.subr.bf16.mxu0 0
    %211 = vmatpush1.bf16.msra.mxu0 %v186
    %212 = vmatprep.subr.bf16.mxu0 0
    %213 = vmatpush1.bf16.msra.mxu0 %v185
    %214 = vmatprep.subr.bf16.mxu0 0
    %215 = vmatpush1.bf16.msra.mxu0 %v184
    %216 = vmatprep.subr.bf16.mxu0 0
    %217 = vmatpush2.bf16.msra.mxu0 0
    %218 = vmatprep.subr.bf16.mxu0 0
    %219 = vmatpush2.bf16.msra.mxu0 0
    %220 = vmatprep.subr.bf16.mxu0 0
    %221 = vmatpush2.bf16.msra.mxu0 0
    %222 = vmatprep.subr.bf16.mxu0 0
    %223 = vmatpush2.bf16.msra.mxu0 0
    %224 = vmatprep.subr.bf16.mxu0 0
    %225 = vmatpush2.bf16.msra.mxu0 0
    %226 = vmatprep.subr.bf16.mxu0 0
    %227 = vmatpush2.bf16.msra.mxu0 0
    %228 = vmatprep.subr.bf16.mxu0 0
    %229 = vmatpush2.bf16.msra.mxu0 0
    %230 = vmatprep.subr.bf16.mxu0 0
    %231 = vmatpush2.bf16.msra.mxu0 0
    %232 = vmatprep.mubr.bf16.mxu0 0
    %233 = vmatmul.mubr.bf16.gmra.mxu0 %v128
    %v234 = vpop.f32.mrf.mxu0
    %v235 = vadd.f32 %v150, %v234
    %v236 = vpop.f32.mrf.mxu0
    %v237 = vpop.f32.mrf.mxu0
    %v238 = vadd.f32 %v150, %v237
    %v239 = vpop.f32.mrf.mxu0
    %240 = vdwg.mxu0
    %v241 = vmul.f32 %v235, 0.5
    %v242 = vmul.f32 %v238, 0.5
    %v243 = vtanh.pop %v241
    %v244 = vtanh.pop %v242
    %v245 = vadd.f32 %v243, 1.0
    %v246 = vadd.f32 %v244, 1.0
    %v247 = vmul.f32 %v245, 0.5
    %v248 = vmul.f32 %v246, 0.5
    %v249 = vpack.c.bf16 %v248, %v247
    %v250 = vld [vmem:[#allocation5] sm:$0xf]
    %v251 = vld [vmem:[#allocation5 + $0x4] sm:$0xf]
    %v252 = vld [vmem:[#allocation5 + $0x8] sm:$0xf]
    %v253 = vld [vmem:[#allocation5 + $0xc] sm:$0xf]
    %v254 = vld [vmem:[#allocation5 + $0x10] sm:$0xf]
    %v255 = vld [vmem:[#allocation5 + $0x14] sm:$0xf]
    %v256 = vld [vmem:[#allocation5 + $0x18] sm:$0xf]
    %v257 = vld [vmem:[#allocation5 + $0x1c] sm:$0xf]
    %v258 = vld [vmem:[#allocation5 + $0x20] sm:$0xf]
    %v259 = vld [vmem:[#allocation5 + $0x24] sm:$0xf]
    %v260 = vld [vmem:[#allocation5 + $0x28] sm:$0xf]
    %v261 = vld [vmem:[#allocation5 + $0x2c] sm:$0xf]
    %v262 = vld [vmem:[#allocation5 + $0x30] sm:$0xf]
    %v263 = vld [vmem:[#allocation5 + $0x34] sm:$0xf]
    %v264 = vld [vmem:[#allocation5 + $0x38] sm:$0xf]
    %v265 = vld [vmem:[#allocation5 + $0x3c] sm:$0xf]
    %v266 = vld [vmem:[%s6] sm:$0x1]
    %v268 = vlaneseq
    %v269 = vshrl.u32 %v268, 7
    %v270 = vsub.s32 0, %v269
    %v271 = vrot.slane %v266, %v270
    %v289 = vunpack.c.l.b16 %v250
    %v290 = vunpack.c.l.b16 %v251
    %v291 = vunpack.c.l.b16 %v252
    %v292 = vunpack.c.l.b16 %v253
    %v293 = vunpack.c.l.b16 %v254
    %v294 = vunpack.c.l.b16 %v255
    %v295 = vunpack.c.l.b16 %v256
    %v296 = vunpack.c.l.b16 %v257
    %v297 = vunpack.c.l.b16 %v258
    %v298 = vunpack.c.l.b16 %v259
    %v299 = vunpack.c.l.b16 %v260
    %v300 = vunpack.c.l.b16 %v261
    %v301 = vunpack.c.l.b16 %v262
    %v302 = vunpack.c.l.b16 %v263
    %v303 = vunpack.c.l.b16 %v264
    %v304 = vunpack.c.l.b16 %v265
    %v305 = vpack.c.b16 %v290, %v289
    %v306 = vpack.c.b16 %v292, %v291
    %v307 = vpack.c.b16 %v294, %v293
    %v308 = vpack.c.b16 %v296, %v295
    %v309 = vpack.c.b16 %v298, %v297
    %v310 = vpack.c.b16 %v300, %v299
    %v311 = vpack.c.b16 %v302, %v301
    %v312 = vpack.c.b16 %v304, %v303
    %321 = vmatprep.subr.bf16.mxu0 0
    %322 = vmatpush1.bf16.msra.mxu0 %v312
    %323 = vmatprep.subr.bf16.mxu0 0
    %324 = vmatpush1.bf16.msra.mxu0 %v311
    %325 = vmatprep.subr.bf16.mxu0 0
    %326 = vmatpush1.bf16.msra.mxu0 %v310
    %327 = vmatprep.subr.bf16.mxu0 0
    %328 = vmatpush1.bf16.msra.mxu0 %v309
    %329 = vmatprep.subr.bf16.mxu0 0
    %330 = vmatpush1.bf16.msra.mxu0 %v308
    %331 = vmatprep.subr.bf16.mxu0 0
    %332 = vmatpush1.bf16.msra.mxu0 %v307
    %333 = vmatprep.subr.bf16.mxu0 0
    %334 = vmatpush1.bf16.msra.mxu0 %v306
    %335 = vmatprep.subr.bf16.mxu0 0
    %336 = vmatpush1.bf16.msra.mxu0 %v305
    %337 = vmatprep.subr.bf16.mxu0 0
    %338 = vmatpush2.bf16.msra.mxu0 0
    %339 = vmatprep.subr.bf16.mxu0 0
    %340 = vmatpush2.bf16.msra.mxu0 0
    %341 = vmatprep.subr.bf16.mxu0 0
    %342 = vmatpush2.bf16.msra.mxu0 0
    %343 = vmatprep.subr.bf16.mxu0 0
    %344 = vmatpush2.bf16.msra.mxu0 0
    %345 = vmatprep.subr.bf16.mxu0 0
    %346 = vmatpush2.bf16.msra.mxu0 0
    %347 = vmatprep.subr.bf16.mxu0 0
    %348 = vmatpush2.bf16.msra.mxu0 0
    %349 = vmatprep.subr.bf16.mxu0 0
    %350 = vmatpush2.bf16.msra.mxu0 0
    %351 = vmatprep.subr.bf16.mxu0 0
    %352 = vmatpush2.bf16.msra.mxu0 0
    %353 = vmatprep.mubr.bf16.mxu0 0
    %354 = vmatmul.mubr.bf16.gmra.mxu0 %v249
    %v355 = vpop.f32.mrf.mxu0
    %v356 = vadd.f32 %v271, %v355
    %v357 = vpop.f32.mrf.mxu0
    %v358 = vpop.f32.mrf.mxu0
    %v359 = vadd.f32 %v271, %v358
    %v360 = vpop.f32.mrf.mxu0
    %361 = vdwg.mxu0
    %v362 = vpack.c.bf16 %v359, %v356
    %v364 = vunpack.c.l.b16 %v362
    %v365 = vunpack.c.h.b16 %v362
    %v366 = vpack.c.b16 %v364, %v364
    %v367 = vpack.c.b16 %v365, %v365
    %370 = vst [vmem:[#allocation7] sm:$0xf] %v366
    %371 = vst [vmem:[#allocation7 + $0x4] sm:$0xf] %v367
    // Predicated region
    $region38: #{tpu_custom_call.1} parent=1 // pred_check
      _
    $region39: #{tpu_custom_call.1} parent=1 // pred_check_branch
      %373 = sbr.rel (0) target = $region41
    $region40: #{tpu_custom_call.1} parent=1 // pred_region
      %s375 = ssub.s32 128, 128
      %376 = vsyncadd [#allocation4], %s375
      %s377 = sshll.u32 [#allocation7], 4
      %s378 = int_to_ptr.vmem [resolvable:$true] %s377
      %383 = dma.vmem_to_hbm [thread:$0]  %s378, 128, %s7, [#allocation4], 64, 64, 4
    $region41: #{tpu_custom_call.1} parent=1 // pred_fallthru
      _
    // Predicated region
    $region42: #{tpu_custom_call.1} parent=1 // pred_check
      _
    $region43: #{tpu_custom_call.1} parent=1 // pred_check_branch
      %385 = sbr.rel (0) target = $region45
    $region44: #{tpu_custom_call.1} parent=1 // pred_region
      %386 = dma.done [#allocation4], 128
    $region45: #{tpu_custom_call.1} parent=1 // pred_fallthru
      _
    %387 = vsyncpa [#allocation3], 1
    %388 = vsyncpa [#allocation6], 1
    %389 = vsyncpa [#allocation4], 1

</llo_original>
